<compile_context>
chip_gen: v7x
topology: tpu7x:2x2x1
jax: 0.10.0
libtpu: 0.0.40
codegen_flags: <defaults>
</compile_context>

<pallas_src>
import jax
import jax.numpy as jnp
from jax import lax
from jax.experimental import pallas as pl
from jax.experimental.pallas import tpu as pltpu

EPSILON = 1e-08

# dot_general dims contracting the LAST axis of both operands
# (x @ y.T without materializing a transpose).
_NT_DIMS = (((1,), (1,)), ((), ()))

_VMEM_CAP_BYTES = 48 << 20  # v7x-safe request (physical VMEM is 64 MiB there)


def _recip(x):
    """1/x via EUP approximate reciprocal + one Newton step (f32 accurate).

    The tiny floor keeps a fully-underflowed softmax denominator from turning
    into NaN; for ordinary inputs it is a no-op."""
    x = jnp.maximum(x, jnp.float32(1e-30))
    r = pl.reciprocal(x, approx=True)
    return r * (2.0 - x * r)


def walker_visit_kernel(a_ref, b_ref, lab_col_ref, lab_row_ref,
                        walker_ref, visit_ref):
    a = a_ref[...]                               # [n, d], caller dtype
    b_dm = b_ref[...]                            # [d, m], caller dtype (pre-laid-out)
    labels_col = lab_col_ref[...]                # [n, 1] int32
    labels_row = lab_row_ref[...]                # [1, n] int32

    n, d = a.shape
    m = b_dm.shape[1]

    # p = (a @ b.T) / sqrt(d) as a plain NN matmul (b arrives as [d, m]),
    # f32-accumulated on the MXU.
    p = jnp.dot(a, b_dm, preferred_element_type=jnp.float32)      # [n, m]
    p = p * (float(d) ** -0.5)

    # One shared exponent for both softmaxes (shift-invariant -> exact).
    row_max = jnp.max(p, axis=1, keepdims=True)                   # [n, 1] (XLU)
    g_max = jnp.max(row_max, axis=0, keepdims=True)               # [1, 1]
    e = jnp.exp(p - g_max)                                        # [n, m] single EUP pass

    # Axis sums as ones-vector matmuls -> idle MXU, frees the XLU slot.
    ones_m1 = jnp.ones((m, 1), jnp.float32)
    ones_1n = jnp.ones((1, n), jnp.float32)
    row_sum = jnp.dot(e, ones_m1, preferred_element_type=jnp.float32)   # [n, 1]
    col_sum = jnp.dot(ones_1n, e, preferred_element_type=jnp.float32)   # [1, m]

    ab = e * _recip(row_sum)                                      # row softmax        [n, m]
    ba_cols = e * _recip(col_sum)                                 # col softmax (untransposed) [n, m]

    # aba[i, k] = sum_j ab[i, j] * ba[j, k] = sum_j ab[i, j] * ba_cols[k, j]
    # (NT form: p.T / ba are never materialized).
    aba = lax.dot_general(ab, ba_cols, dimension_numbers=_NT_DIMS,
                          preferred_element_type=jnp.float32)      # [n, n]

    # Walker loss: same-label mask row-normalized by label count; the
    # 1/label_count is folded after the row-sum ([n,1] work, not [n,n]).
    is_same = (labels_col == labels_row).astype(jnp.float32)       # [n, n]
    label_count = jnp.sum(is_same, axis=1, keepdims=True)          # [n, 1]
    row_ce = jnp.sum(is_same * jnp.log(EPSILON + aba),
                     axis=1, keepdims=True)                        # [n, 1]
    walker = -(1.0 / n) * jnp.sum(row_ce * _recip(label_count),
                                  axis=0, keepdims=True)           # [1, 1]

    # Visit loss: -(1/m) * sum_j log(eps + mean_i ab[i, j]); column sum on MXU.
    visit_colsum = jnp.dot(ones_1n, ab, preferred_element_type=jnp.float32)  # [1, m]
    visit_probability = visit_colsum * (1.0 / n)                   # [1, m]
    visit = -(1.0 / m) * jnp.sum(jnp.log(EPSILON + visit_probability),
                                 axis=1, keepdims=True)            # [1, 1]

    walker_ref[...] = walker
    visit_ref[...] = visit


def _round_up(x, k):
    return ((x + k - 1) // k) * k


def _tile_bytes(rows, cols, itemsize=4):
    return _round_up(rows, 8) * _round_up(cols, 128) * itemsize


def _vmem_estimate_bytes(n, m, d, itemsize):
    # Per-instance input/output blocks (double-buffered by the pipeline)
    # plus the live f32 intermediates (p, e, ab, ba_cols, aba, is_same, ...).
    blocks = (_tile_bytes(n, d, itemsize) + _tile_bytes(d, m, itemsize)
              + _tile_bytes(n, 1) + _tile_bytes(1, n) + 2 * _tile_bytes(1, 1))
    interm = (4 * _tile_bytes(n, m) + 2 * _tile_bytes(n, n)
              + 4 * _tile_bytes(n, 1) + 4 * _tile_bytes(1, m))
    return 2 * blocks + interm


def walker_visit_losses_batched(a, b, labels_for_a):
    """Batched walker/visit losses.

    a: [B, n, d] float, b: [B, m, d] float, labels_for_a: [B, n] int.
    Returns (walker_loss, visit_loss), each float32 of shape [B]."""
    B, n, d = a.shape
    m = b.shape[1]
    itemsize = jnp.dtype(a.dtype).itemsize

    est = _vmem_estimate_bytes(n, m, d, itemsize)
    if est > _VMEM_CAP_BYTES:
        # TODO(synk): add a tiled variant (grid over n with online column stats
        # for the ba path) for instances that do not fit a single VMEM tile.
        raise NotImplementedError(
            f"single-tile walker/visit kernel needs ~{est >> 20} MiB VMEM "
            f"(> {_VMEM_CAP_BYTES >> 20} MiB v7x-safe cap)")
    vmem_limit = int(min(max(4 * est, 32 << 20), _VMEM_CAP_BYTES))

    # Wrapper-side layout plumbing (free): b as [d, m] so the big dot is NN and
    # Mosaic never needs an RHS transpose; labels in both orientations so the
    # kernel never transposes a skinny int32 vector in VMEM.
    b_dm = jnp.swapaxes(b, 1, 2)
    labels_i32 = labels_for_a.astype(jnp.int32)
    lab_col = labels_i32.reshape(B, n, 1)
    lab_row = labels_i32.reshape(B, 1, n)

    cost = pl.CostEstimate(
        flops=2 * B * (n * m * d + n * n * m + 3 * n * m),
        transcendentals=B * (n * m + n * n + 2 * m + 2 * n),
        bytes_accessed=B * (itemsize * (n * d + m * d) + 4 * 2 * n + 8),
    )

    walker, visit = pl.pallas_call(
        walker_visit_kernel,
        out_shape=(
            jax.ShapeDtypeStruct((B, 1, 1), jnp.float32),
            jax.ShapeDtypeStruct((B, 1, 1), jnp.float32),
        ),
        grid=(B,),
        in_specs=[
            pl.BlockSpec((None, n, d), lambda i: (i, 0, 0)),
            pl.BlockSpec((None, d, m), lambda i: (i, 0, 0)),
            pl.BlockSpec((None, n, 1), lambda i: (i, 0, 0)),
            pl.BlockSpec((None, 1, n), lambda i: (i, 0, 0)),
        ],
        out_specs=(
            pl.BlockSpec((None, 1, 1), lambda i: (i, 0, 0)),
            pl.BlockSpec((None, 1, 1), lambda i: (i, 0, 0)),
        ),
        compiler_params=pltpu.CompilerParams(
            dimension_semantics=("parallel",),
            vmem_limit_bytes=vmem_limit,
        ),
        cost_estimate=cost,
    )(a, b_dm, lab_col, lab_row)

    return walker[:, 0, 0], visit[:, 0, 0]


def walker_visit_losses(a, b, labels_for_a):
    """Single-instance entry point matching the PyTorch module.

    a: [n, d], b: [m, d], labels_for_a: [n] -> two scalar float32 losses."""
    walker, visit = walker_visit_losses_batched(a[None], b[None],
                                                labels_for_a[None])
    return walker[0], visit[0]


def walker_visit_losses_ref(a, b, labels_for_a):
    """Pure-JAX reference mirroring the PyTorch forward."""
    d = a.shape[1]
    m = b.shape[0]
    p = (a.astype(jnp.float32) @ b.astype(jnp.float32).T) / jnp.sqrt(jnp.float32(d))
    ab = jax.nn.softmax(p, axis=1)
    ba = jax.nn.softmax(p.T, axis=1)
    aba = ab @ ba
    labels = labels_for_a[None, :]
    is_same = (labels == labels.T).astype(jnp.float32)
    targets = is_same / jnp.sum(is_same, axis=1, keepdims=True)
    walker_loss = -jnp.mean(jnp.sum(targets * jnp.log(EPSILON + aba), axis=1))
    visit_probability = jnp.mean(ab, axis=0)
    visit_loss = -jnp.sum((1.0 / m) * jnp.log(EPSILON + visit_probability))
    return walker_loss, visit_loss


if __name__ == "__main__":
    n, m, d, num_labels = 16, 24, 32, 4
    B = 4

    key = jax.random.PRNGKey(0)
    ka, kb, kl, kab, kbb, klb = jax.random.split(key, 6)

    # --- Single-instance path (matches the PyTorch module signature). ---
    a = jax.random.normal(ka, (n, d), dtype=jnp.float32)
    b = jax.random.normal(kb, (m, d), dtype=jnp.float32)
    labels_for_a = jax.random.randint(kl, (n,), 0, num_labels, dtype=jnp.int32)

    walker_loss, visit_loss = walker_visit_losses(a, b, labels_for_a)
    jax.block_until_ready((walker_loss, visit_loss))

    walker_ref, visit_ref = walker_visit_losses_ref(a, b, labels_for_a)
    assert jnp.allclose(walker_loss, walker_ref, rtol=1e-4, atol=1e-4), (
        walker_loss, walker_ref)
    assert jnp.allclose(visit_loss, visit_ref, rtol=1e-4, atol=1e-4), (
        visit_loss, visit_ref)

    # --- Batched path: B independent instances, one "parallel" grid step each. ---
    a_b = jax.random.normal(kab, (B, n, d), dtype=jnp.float32)
    b_b = jax.random.normal(kbb, (B, m, d), dtype=jnp.float32)
    labels_b = jax.random.randint(klb, (B, n), 0, num_labels, dtype=jnp.int32)

    walker_b, visit_b = walker_visit_losses_batched(a_b, b_b, labels_b)
    jax.block_until_ready((walker_b, visit_b))

    for i in range(B):
        w_r, v_r = walker_visit_losses_ref(a_b[i], b_b[i], labels_b[i])
        assert jnp.allclose(walker_b[i], w_r, rtol=1e-4, atol=1e-4), (i, walker_b[i], w_r)
        assert jnp.allclose(visit_b[i], v_r, rtol=1e-4, atol=1e-4), (i, visit_b[i], v_r)

    print("KERNEL_OK")
</pallas_src>

<mosaic_0001>
module attributes {stable_mosaic.version = 11 : i64} {
  func.func @walker_visit_kernel(%arg0: i32, %arg1: memref<1x16x32xf32, #tpu.memory_space<vmem>>, %arg2: memref<1x32x24xf32, #tpu.memory_space<vmem>>, %arg3: memref<1x16x1xi32, #tpu.memory_space<vmem>>, %arg4: memref<1x1x16xi32, #tpu.memory_space<vmem>>, %arg5: memref<1x1x1xf32, #tpu.memory_space<vmem>>, %arg6: memref<1x1x1xf32, #tpu.memory_space<vmem>>) attributes {dimension_semantics = [#tpu.dimension_semantics<parallel>], iteration_bounds = array<i64: 1>, scalar_prefetch = 0 : i64, scratch_operands = 0 : i64, tpu.core_type = #tpu.core_type<tc>, window_params = [{transform_indices = @transform_0, window_bounds = array<i64: 1, 16, 32>}, {transform_indices = @transform_1, window_bounds = array<i64: 1, 32, 24>}, {transform_indices = @transform_2, window_bounds = array<i64: 1, 16, 1>}, {transform_indices = @transform_3, window_bounds = array<i64: 1, 1, 16>}, {transform_indices = @transform_4, window_bounds = array<i64: 1, 1, 1>}, {transform_indices = @transform_5, window_bounds = array<i64: 1, 1, 1>}]} {
    %c0 = arith.constant 0 : index
    %c0_0 = arith.constant 0 : index
    %c0_1 = arith.constant 0 : index
    %0 = vector.load %arg1[%c0, %c0_0, %c0_1] : memref<1x16x32xf32, #tpu.memory_space<vmem>>, vector<1x16x32xf32>
    %1 = vector.shape_cast %0 : vector<1x16x32xf32> to vector<16x32xf32>
    %c0_2 = arith.constant 0 : index
    %c0_3 = arith.constant 0 : index
    %c0_4 = arith.constant 0 : index
    %2 = vector.load %arg2[%c0_2, %c0_3, %c0_4] : memref<1x32x24xf32, #tpu.memory_space<vmem>>, vector<1x32x24xf32>
    %3 = vector.shape_cast %2 : vector<1x32x24xf32> to vector<32x24xf32>
    %c0_5 = arith.constant 0 : index
    %c0_6 = arith.constant 0 : index
    %c0_7 = arith.constant 0 : index
    %4 = vector.load %arg3[%c0_5, %c0_6, %c0_7] : memref<1x16x1xi32, #tpu.memory_space<vmem>>, vector<1x16x1xi32>
    %5 = vector.shape_cast %4 : vector<1x16x1xi32> to vector<16x1xi32>
    %c0_8 = arith.constant 0 : index
    %c0_9 = arith.constant 0 : index
    %c0_10 = arith.constant 0 : index
    %6 = vector.load %arg4[%c0_8, %c0_9, %c0_10] : memref<1x1x16xi32, #tpu.memory_space<vmem>>, vector<1x1x16xi32>
    %7 = vector.shape_cast %6 : vector<1x1x16xi32> to vector<1x16xi32>
    %cst = arith.constant dense<0.000000e+00> : vector<16x24xf32>
    %8 = tpu.matmul %1, %3, %cst {dimension_numbers = #tpu.dot_dimension_numbers<[1], [0], [0], [1], [0, 0, 1, 1], [], []>} : vector<16x32xf32>, vector<32x24xf32>, vector<16x24xf32> -> vector<16x24xf32>
    %cst_11 = arith.constant 0.176776692 : f32
    %9 = vector.broadcast %cst_11 : f32 to vector<16x24xf32>
    %10 = arith.mulf %8, %9 : vector<16x24xf32>
    %cst_12 = arith.constant dense<0xFF800000> : vector<16xf32>
    %11 = vector.multi_reduction <maximumf>, %10, %cst_12 [1] : vector<16x24xf32> to vector<16xf32>
    %12 = vector.shape_cast %11 : vector<16xf32> to vector<16x1xf32>
    %cst_13 = arith.constant dense<0xFF800000> : vector<1xf32>
    %13 = vector.multi_reduction <maximumf>, %12, %cst_13 [0] : vector<16x1xf32> to vector<1xf32>
    %14 = vector.shape_cast %13 : vector<1xf32> to vector<1x1xf32>
    %15 = vector.broadcast %14 : vector<1x1xf32> to vector<16x24xf32>
    %16 = arith.subf %10, %15 : vector<16x24xf32>
    %17 = math.exp %16 : vector<16x24xf32>
    %cst_14 = arith.constant 1.000000e+00 : f32
    %18 = vector.broadcast %cst_14 : f32 to vector<24x1xf32>
    %cst_15 = arith.constant 1.000000e+00 : f32
    %19 = vector.broadcast %cst_15 : f32 to vector<1x16xf32>
    %cst_16 = arith.constant dense<0.000000e+00> : vector<16x1xf32>
    %20 = tpu.matmul %17, %18, %cst_16 {dimension_numbers = #tpu.dot_dimension_numbers<[1], [0], [0], [1], [0, 0, 1, 1], [], []>} : vector<16x24xf32>, vector<24x1xf32>, vector<16x1xf32> -> vector<16x1xf32>
    %cst_17 = arith.constant dense<0.000000e+00> : vector<1x24xf32>
    %21 = tpu.matmul %19, %17, %cst_17 {dimension_numbers = #tpu.dot_dimension_numbers<[1], [0], [0], [1], [0, 0, 1, 1], [], []>} : vector<1x16xf32>, vector<16x24xf32>, vector<1x24xf32> -> vector<1x24xf32>
    %cst_18 = arith.constant 1.000000e-30 : f32
    %22 = vector.broadcast %cst_18 : f32 to vector<16x1xf32>
    %23 = arith.maximumf %20, %22 : vector<16x1xf32>
    %24 = tpu.reciprocal %23 {approx = true} : vector<16x1xf32> -> vector<16x1xf32>
    %25 = arith.mulf %23, %24 : vector<16x1xf32>
    %cst_19 = arith.constant 2.000000e+00 : f32
    %26 = vector.broadcast %cst_19 : f32 to vector<16x1xf32>
    %27 = arith.subf %26, %25 : vector<16x1xf32>
    %28 = arith.mulf %24, %27 : vector<16x1xf32>
    %29 = vector.broadcast %28 : vector<16x1xf32> to vector<16x24xf32>
    %30 = arith.mulf %17, %29 : vector<16x24xf32>
    %cst_20 = arith.constant 1.000000e-30 : f32
    %31 = vector.broadcast %cst_20 : f32 to vector<1x24xf32>
    %32 = arith.maximumf %21, %31 : vector<1x24xf32>
    %33 = tpu.reciprocal %32 {approx = true} : vector<1x24xf32> -> vector<1x24xf32>
    %34 = arith.mulf %32, %33 : vector<1x24xf32>
    %cst_21 = arith.constant 2.000000e+00 : f32
    %35 = vector.broadcast %cst_21 : f32 to vector<1x24xf32>
    %36 = arith.subf %35, %34 : vector<1x24xf32>
    %37 = arith.mulf %33, %36 : vector<1x24xf32>
    %38 = vector.broadcast %37 : vector<1x24xf32> to vector<16x24xf32>
    %39 = arith.mulf %17, %38 : vector<16x24xf32>
    %cst_22 = arith.constant dense<0.000000e+00> : vector<16x16xf32>
    %40 = tpu.matmul %30, %39, %cst_22 {dimension_numbers = #tpu.dot_dimension_numbers<[1], [1], [0], [0], [0, 0, 1, 0], [], []>} : vector<16x24xf32>, vector<16x24xf32>, vector<16x16xf32> -> vector<16x16xf32>
    %41 = vector.broadcast %5 : vector<16x1xi32> to vector<16x16xi32>
    %42 = vector.broadcast %7 : vector<1x16xi32> to vector<16x16xi32>
    %43 = arith.cmpi eq, %41, %42 : vector<16x16xi32>
    %44 = arith.extui %43 : vector<16x16xi1> to vector<16x16xi32>
    %45 = arith.sitofp %44 : vector<16x16xi32> to vector<16x16xf32>
    %cst_23 = arith.constant dense<0.000000e+00> : vector<16xf32>
    %46 = vector.multi_reduction <add>, %45, %cst_23 [1] : vector<16x16xf32> to vector<16xf32>
    %47 = vector.shape_cast %46 : vector<16xf32> to vector<16x1xf32>
    %cst_24 = arith.constant 9.99999993E-9 : f32
    %48 = vector.broadcast %cst_24 : f32 to vector<16x16xf32>
    %49 = arith.addf %48, %40 : vector<16x16xf32>
    %50 = math.log %49 : vector<16x16xf32>
    %51 = arith.mulf %45, %50 : vector<16x16xf32>
    %cst_25 = arith.constant dense<0.000000e+00> : vector<16xf32>
    %52 = vector.multi_reduction <add>, %51, %cst_25 [1] : vector<16x16xf32> to vector<16xf32>
    %53 = vector.shape_cast %52 : vector<16xf32> to vector<16x1xf32>
    %cst_26 = arith.constant 1.000000e-30 : f32
    %54 = vector.broadcast %cst_26 : f32 to vector<16x1xf32>
    %55 = arith.maximumf %47, %54 : vector<16x1xf32>
    %56 = tpu.reciprocal %55 {approx = true} : vector<16x1xf32> -> vector<16x1xf32>
    %57 = arith.mulf %55, %56 : vector<16x1xf32>
    %cst_27 = arith.constant 2.000000e+00 : f32
    %58 = vector.broadcast %cst_27 : f32 to vector<16x1xf32>
    %59 = arith.subf %58, %57 : vector<16x1xf32>
    %60 = arith.mulf %56, %59 : vector<16x1xf32>
    %61 = arith.mulf %53, %60 : vector<16x1xf32>
    %cst_28 = arith.constant dense<0.000000e+00> : vector<1xf32>
    %62 = vector.multi_reduction <add>, %61, %cst_28 [0] : vector<16x1xf32> to vector<1xf32>
    %63 = vector.shape_cast %62 : vector<1xf32> to vector<1x1xf32>
    %cst_29 = arith.constant -6.250000e-02 : f32
    %64 = vector.broadcast %cst_29 : f32 to vector<1x1xf32>
    %65 = arith.mulf %64, %63 : vector<1x1xf32>
    %cst_30 = arith.constant dense<0.000000e+00> : vector<1x24xf32>
    %66 = tpu.matmul %19, %30, %cst_30 {dimension_numbers = #tpu.dot_dimension_numbers<[1], [0], [0], [1], [0, 0, 1, 1], [], []>} : vector<1x16xf32>, vector<16x24xf32>, vector<1x24xf32> -> vector<1x24xf32>
    %cst_31 = arith.constant 6.250000e-02 : f32
    %67 = vector.broadcast %cst_31 : f32 to vector<1x24xf32>
    %68 = arith.mulf %66, %67 : vector<1x24xf32>
    %cst_32 = arith.constant 9.99999993E-9 : f32
    %69 = vector.broadcast %cst_32 : f32 to vector<1x24xf32>
    %70 = arith.addf %69, %68 : vector<1x24xf32>
    %71 = math.log %70 : vector<1x24xf32>
    %cst_33 = arith.constant dense<0.000000e+00> : vector<1xf32>
    %72 = vector.multi_reduction <add>, %71, %cst_33 [1] : vector<1x24xf32> to vector<1xf32>
    %73 = vector.shape_cast %72 : vector<1xf32> to vector<1x1xf32>
    %cst_34 = arith.constant -0.0416666679 : f32
    %74 = vector.broadcast %cst_34 : f32 to vector<1x1xf32>
    %75 = arith.mulf %74, %73 : vector<1x1xf32>
    %c0_35 = arith.constant 0 : index
    %c0_36 = arith.constant 0 : index
    %c0_37 = arith.constant 0 : index
    %76 = vector.load %arg5[%c0_35, %c0_36, %c0_37] : memref<1x1x1xf32, #tpu.memory_space<vmem>>, vector<1x1x1xf32>
    %77 = vector.shape_cast %76 : vector<1x1x1xf32> to vector<1x1xf32>
    %78 = vector.shape_cast %65 : vector<1x1xf32> to vector<1x1x1xf32>
    tpu.vector_store %arg5[%c0_35, %c0_36, %c0_37], %78 {strides = array<i32>} : memref<1x1x1xf32, #tpu.memory_space<vmem>>, vector<1x1x1xf32>,
    %c0_38 = arith.constant 0 : index
    %c0_39 = arith.constant 0 : index
    %c0_40 = arith.constant 0 : index
    %79 = vector.load %arg6[%c0_38, %c0_39, %c0_40] : memref<1x1x1xf32, #tpu.memory_space<vmem>>, vector<1x1x1xf32>
    %80 = vector.shape_cast %79 : vector<1x1x1xf32> to vector<1x1xf32>
    %81 = vector.shape_cast %75 : vector<1x1xf32> to vector<1x1x1xf32>
    tpu.vector_store %arg6[%c0_38, %c0_39, %c0_40], %81 {strides = array<i32>} : memref<1x1x1xf32, #tpu.memory_space<vmem>>, vector<1x1x1xf32>,
    return
  }
  func.func @transform_0(%arg0: i32) -> (i32, i32, i32) {
    %c0_i32 = arith.constant 0 : i32
    %c0_i32_0 = arith.constant 0 : i32
    %c0_i32_1 = arith.constant 0 : i32
    return %arg0, %c0_i32, %c0_i32_0 : i32, i32, i32
  }
  func.func @transform_1(%arg0: i32) -> (i32, i32, i32) {
    %c0_i32 = arith.constant 0 : i32
    %c0_i32_0 = arith.constant 0 : i32
    %c0_i32_1 = arith.constant 0 : i32
    return %arg0, %c0_i32, %c0_i32_0 : i32, i32, i32
  }
  func.func @transform_2(%arg0: i32) -> (i32, i32, i32) {
    %c0_i32 = arith.constant 0 : i32
    %c0_i32_0 = arith.constant 0 : i32
    %c0_i32_1 = arith.constant 0 : i32
    return %arg0, %c0_i32, %c0_i32_0 : i32, i32, i32
  }
  func.func @transform_3(%arg0: i32) -> (i32, i32, i32) {
    %c0_i32 = arith.constant 0 : i32
    %c0_i32_0 = arith.constant 0 : i32
    %c0_i32_1 = arith.constant 0 : i32
    return %arg0, %c0_i32, %c0_i32_0 : i32, i32, i32
  }
  func.func @transform_4(%arg0: i32) -> (i32, i32, i32) {
    %c0_i32 = arith.constant 0 : i32
    %c0_i32_0 = arith.constant 0 : i32
    %c0_i32_1 = arith.constant 0 : i32
    return %arg0, %c0_i32, %c0_i32_0 : i32, i32, i32
  }
  func.func @transform_5(%arg0: i32) -> (i32, i32, i32) {
    %c0_i32 = arith.constant 0 : i32
    %c0_i32_0 = arith.constant 0 : i32
    %c0_i32_1 = arith.constant 0 : i32
    return %arg0, %c0_i32, %c0_i32_0 : i32, i32, i32
  }
}

</mosaic_0001>

<llo_original>
// kernel: tpu_custom_call.1
$region0: #{tpu_custom_call.1}
  #allocation0 [shape = 'u32[]', space=smem, size = 0x4, offset = 0x4, fixed_abs, tag = 'smem constant byte address 0x4 - core index']
  #allocation1 [shape = 'u32[144,128]{1,0:T(1,128)}', space=vmem, size = 0x12000, scoped, tag = 'internal scratch']
  %s0 = inlined_call_operand.vmem [shape: f32[1,16,32], index: 0, kind: input, shape index: {}]
  %s1 = inlined_call_operand.vmem [shape: f32[1,32,24], index: 1, kind: input, shape index: {}]
  %s2 = inlined_call_operand.vmem [shape: s32[1,16,1], index: 2, kind: input, shape index: {}]
  %s3 = inlined_call_operand.vmem [shape: s32[1,1,16], index: 3, kind: input, shape index: {}]
  %s4 = inlined_call_operand.hbm [shape: f32[1,1,1], index: 4, kind: output, shape index: {0}]
  %s5 = inlined_call_operand.hbm [shape: f32[1,1,1], index: 5, kind: output, shape index: {1}]
  %6 = xla_tuple %s4, %s5
  %s7 = sld [smem:[#allocation0]]
  $region34: #{tpu_custom_call.1} parent=0
    _
  %s9 = ssub.s32 1, %s7
  %s10 = scalar_select 0, %s9, %s7
  $region1: #{tpu_custom_call.1} parent=0
    #allocation2 [shape = 'u8[512]{0}', space=vmem, size = 0x400, scoped, tag = 'output window, operand 0, single buffered']
    #allocation3 [shape = 's32[1]{0}', space=sflag, size = 0x4, scoped, tag = 'scoped memory for tpu_custom_call.1']
    #allocation4 [shape = 'u8[512]{0}', space=vmem, size = 0x400, scoped, tag = 'output window, operand 1, single buffered']
    #allocation5 [shape = 's32[1]{0}', space=sflag, size = 0x4, scoped, tag = 'scoped memory for tpu_custom_call.1']
    %11 = vsyncpa [#allocation3], 0
    %12 = vsyncpa [#allocation5], 0
    // Predicated region
    $region2: #{tpu_custom_call.1} parent=1 // pred_check
      _
    $region3: #{tpu_custom_call.1} parent=1 // pred_check_branch
      %14 = sbr.rel (0) target = $region5
    $region4: #{tpu_custom_call.1} parent=1 // pred_region
      _
    $region5: #{tpu_custom_call.1} parent=1 // pred_fallthru
      _
    // Predicated region
    $region6: #{tpu_custom_call.1} parent=1 // pred_check
      _
    $region7: #{tpu_custom_call.1} parent=1 // pred_check_branch
      %16 = sbr.rel (0) target = $region9
    $region8: #{tpu_custom_call.1} parent=1 // pred_region
      _
    $region9: #{tpu_custom_call.1} parent=1 // pred_fallthru
      _
    // Predicated region
    $region10: #{tpu_custom_call.1} parent=1 // pred_check
      _
    $region11: #{tpu_custom_call.1} parent=1 // pred_check_branch
      %18 = sbr.rel (0) target = $region13
    $region12: #{tpu_custom_call.1} parent=1 // pred_region
      _
    $region13: #{tpu_custom_call.1} parent=1 // pred_fallthru
      _
    // Predicated region
    $region14: #{tpu_custom_call.1} parent=1 // pred_check
      _
    $region15: #{tpu_custom_call.1} parent=1 // pred_check_branch
      %20 = sbr.rel (0) target = $region17
    $region16: #{tpu_custom_call.1} parent=1 // pred_region
      _
    $region17: #{tpu_custom_call.1} parent=1 // pred_fallthru
      _
    %v21 = vld [vmem:[%s0] sm:$0xff]
    %v22 = vld [vmem:[%s0 + $0x8] sm:$0xff]
    %v23 = vld [vmem:[%s1] sm:$0xff]
    %v24 = vld [vmem:[%s1 + $0x8] sm:$0xff]
    %v25 = vld [vmem:[%s1 + $0x10] sm:$0xff]
    %v26 = vld [vmem:[%s1 + $0x18] sm:$0xff]
    %v27 = vld [vmem:[%s2] sm:$0xff]
    %v28 = vld [vmem:[%s2 + $0x8] sm:$0xff]
    %v29 = vld [vmem:[%s3] sm:$0x1]
    %vm30 = vcmask 261120
    %v32 = vsel %vm30, %v21, 0
    %v35 = vsel %vm30, %v22, 0
    %37 = vmatprep.subr.mxu0 0.0
    %38 = vmatpush1.msra.mxu0 %v23
    %39 = vmatprep.subr.mxu0 0.0
    %40 = vmatpush1.msra.mxu0 %v24
    %41 = vmatprep.subr.mxu0 0.0
    %42 = vmatpush1.msra.mxu0 %v25
    %43 = vmatprep.subr.mxu0 0.0
    %44 = vmatpush1.msra.mxu0 %v26
    %45 = vmatprep.subr.mxu0 0.0
    %46 = vmatpush1.msra.mxu0 0.0
    %47 = vmatprep.subr.mxu0 0.0
    %48 = vmatpush1.msra.mxu0 0.0
    %49 = vmatprep.subr.mxu0 0.0
    %50 = vmatpush1.msra.mxu0 0.0
    %51 = vmatprep.subr.mxu0 0.0
    %52 = vmatpush1.msra.mxu0 0.0
    %53 = vmatprep.subr.mxu0 0.0
    %54 = vmatpush1.msra.mxu0 0.0
    %55 = vmatprep.subr.mxu0 0.0
    %56 = vmatpush1.msra.mxu0 0.0
    %57 = vmatprep.subr.mxu0 0.0
    %58 = vmatpush1.msra.mxu0 0.0
    %59 = vmatprep.subr.mxu0 0.0
    %60 = vmatpush1.msra.mxu0 0.0
    %61 = vmatprep.subr.mxu0 0.0
    %62 = vmatpush1.msra.mxu0 0.0
    %63 = vmatprep.subr.mxu0 0.0
    %64 = vmatpush1.msra.mxu0 0.0
    %65 = vmatprep.subr.mxu0 0.0
    %66 = vmatpush1.msra.mxu0 0.0
    %67 = vmatprep.subr.mxu0 0.0
    %68 = vmatpush1.msra.mxu0 0.0
    %69 = vmatprep.subr.mxu0 0.0
    %70 = vmatpush1.msra.mxu0 0.0
    %71 = vmatprep.subr.mxu0 0.0
    %72 = vmatpush1.msra.mxu0 0.0
    %73 = vmatprep.subr.mxu0 0.0
    %74 = vmatpush1.msra.mxu0 0.0
    %75 = vmatprep.subr.mxu0 0.0
    %76 = vmatpush1.msra.mxu0 0.0
    %77 = vmatprep.subr.mxu0 0.0
    %78 = vmatpush1.msra.mxu0 0.0
    %79 = vmatprep.subr.mxu0 0.0
    %80 = vmatpush1.msra.mxu0 0.0
    %81 = vmatprep.subr.mxu0 0.0
    %82 = vmatpush1.msra.mxu0 0.0
    %83 = vmatprep.subr.mxu0 0.0
    %84 = vmatpush1.msra.mxu0 0.0
    %85 = vmatprep.subr.mxu0 0.0
    %86 = vmatpush1.msra.mxu0 0.0
    %87 = vmatprep.subr.mxu0 0.0
    %88 = vmatpush1.msra.mxu0 0.0
    %89 = vmatprep.subr.mxu0 0.0
    %90 = vmatpush1.msra.mxu0 0.0
    %91 = vmatprep.subr.mxu0 0.0
    %92 = vmatpush1.msra.mxu0 0.0
    %93 = vmatprep.subr.mxu0 0.0
    %94 = vmatpush1.msra.mxu0 0.0
    %95 = vmatprep.subr.mxu0 0.0
    %96 = vmatpush1.msra.mxu0 0.0
    %97 = vmatprep.subr.mxu0 0.0
    %98 = vmatpush1.msra.mxu0 0.0
    %99 = vmatprep.subr.mxu0 0.0
    %100 = vmatpush1.msra.mxu0 0.0
    %101 = vmatprep.mubr.f32.mxu0 0.0
    %102 = vmatmul.mubr.f32.gmra.mrb[0].mxu0 %v32
    %v103 = vpop.f32.mrb[0].mxu0
    %v104 = vadd.f32 0.0, %v103
    %v105 = vpop.f32.mrb[0].mxu0
    %106 = vmatprep.mubr.f32.mxu0 0.0
    %107 = vmatmul.mubr.f32.gmra.mrb[0].mxu0 %v35
    %v108 = vpop.f32.mrb[0].mxu0
    %v109 = vadd.f32 0.0, %v108
    %v110 = vpop.f32.mrb[0].mxu0
    %111 = vdwg.mxu0
    %v112 = vmul.f32 %v104, 0.17677669
    %v113 = vmul.f32 %v109, 0.17677669
    %vm114 = vcmask 195584
    %v115 = vsel %vm114, %v112, -inf
    %116 = vmax.xlane.f32.xlu0 %v115
    %v117 = vpop.xlane.xlu0 %116
    %v118 = vsel %vm114, %v113, -inf
    %119 = vmax.xlane.f32.xlu0 %v118
    %v120 = vpop.xlane.xlu0 %119
    %v121 = vmax.f32 %v117, %v120
    %v122 = vrot.slane %v121, 4
    %v123 = vmax.f32 %v121, %v122
    %v124 = vrot.slane %v123, 2
    %v125 = vmax.f32 %v123, %v124
    %v126 = vrot.slane %v125, 1
    %v127 = vmax.f32 %v125, %v126
    %v128 = vsub.f32 %v112, %v127
    %v129 = vsub.f32 %v113, %v127
    %v130 = vmul.f32 %v128, 1.442695
    %v131 = vpow.pop %v130
    %v132 = vmul.f32 %v129, 1.442695
    %v133 = vpow.pop %v132
    %v135 = vsel %vm114, %v131, 0
    %v138 = vsel %vm114, %v133, 0
    %140 = vmatprep.subr.mxu0 0.0
    %141 = vmatpush1.msra.mxu0 1.0
    %142 = vmatprep.subr.mxu0 0.0
    %143 = vmatpush1.msra.mxu0 1.0
    %144 = vmatprep.subr.mxu0 0.0
    %145 = vmatpush1.msra.mxu0 1.0
    %146 = vmatprep.subr.mxu0 0.0
    %147 = vmatpush1.msra.mxu0 0.0
    %148 = vmatprep.subr.mxu0 0.0
    %149 = vmatpush1.msra.mxu0 0.0
    %150 = vmatprep.subr.mxu0 0.0
    %151 = vmatpush1.msra.mxu0 0.0
    %152 = vmatprep.subr.mxu0 0.0
    %153 = vmatpush1.msra.mxu0 0.0
    %154 = vmatprep.subr.mxu0 0.0
    %155 = vmatpush1.msra.mxu0 0.0
    %156 = vmatprep.subr.mxu0 0.0
    %157 = vmatpush1.msra.mxu0 0.0
    %158 = vmatprep.subr.mxu0 0.0
    %159 = vmatpush1.msra.mxu0 0.0
    %160 = vmatprep.subr.mxu0 0.0
    %161 = vmatpush1.msra.mxu0 0.0
    %162 = vmatprep.subr.mxu0 0.0
    %163 = vmatpush1.msra.mxu0 0.0
    %164 = vmatprep.subr.mxu0 0.0
    %165 = vmatpush1.msra.mxu0 0.0
    %166 = vmatprep.subr.mxu0 0.0
    %167 = vmatpush1.msra.mxu0 0.0
    %168 = vmatprep.subr.mxu0 0.0
    %169 = vmatpush1.msra.mxu0 0.0
    %170 = vmatprep.subr.mxu0 0.0
    %171 = vmatpush1.msra.mxu0 0.0
    %172 = vmatprep.subr.mxu0 0.0
    %173 = vmatpush1.msra.mxu0 0.0
    %174 = vmatprep.subr.mxu0 0.0
    %175 = vmatpush1.msra.mxu0 0.0
    %176 = vmatprep.subr.mxu0 0.0
    %177 = vmatpush1.msra.mxu0 0.0
    %178 = vmatprep.subr.mxu0 0.0
    %179 = vmatpush1.msra.mxu0 0.0
    %180 = vmatprep.subr.mxu0 0.0
    %181 = vmatpush1.msra.mxu0 0.0
    %182 = vmatprep.subr.mxu0 0.0
    %183 = vmatpush1.msra.mxu0 0.0
    %184 = vmatprep.subr.mxu0 0.0
    %185 = vmatpush1.msra.mxu0 0.0
    %186 = vmatprep.subr.mxu0 0.0
    %187 = vmatpush1.msra.mxu0 0.0
    %188 = vmatprep.subr.mxu0 0.0
    %189 = vmatpush1.msra.mxu0 0.0
    %190 = vmatprep.subr.mxu0 0.0
    %191 = vmatpush1.msra.mxu0 0.0
    %192 = vmatprep.subr.mxu0 0.0
    %193 = vmatpush1.msra.mxu0 0.0
    %194 = vmatprep.subr.mxu0 0.0
    %195 = vmatpush1.msra.mxu0 0.0
    %196 = vmatprep.subr.mxu0 0.0
    %197 = vmatpush1.msra.mxu0 0.0
    %198 = vmatprep.subr.mxu0 0.0
    %199 = vmatpush1.msra.mxu0 0.0
    %200 = vmatprep.subr.mxu0 0.0
    %201 = vmatpush1.msra.mxu0 0.0
    %202 = vmatprep.subr.mxu0 0.0
    %203 = vmatpush1.msra.mxu0 0.0
    %204 = vmatprep.mubr.f32.mxu0 0.0
    %205 = vmatmul.mubr.f32.gmra.mrb[0].mxu0 %v135
    %v206 = vpop.f32.mrb[0].mxu0
    %v207 = vadd.f32 0.0, %v206
    %v208 = vpop.f32.mrb[0].mxu0
    %209 = vmatprep.mubr.f32.mxu0 0.0
    %210 = vmatmul.mubr.f32.gmra.mrb[0].mxu0 %v138
    %v211 = vpop.f32.mrb[0].mxu0
    %v212 = vadd.f32 0.0, %v211
    %v213 = vpop.f32.mrb[0].mxu0
    %214 = vdwg.mxu0
    %vm215 = vcmask 130048
    %v217 = vsel %vm215, 1.0, 0
    %219 = vmatprep.subr.mxu0 0.0
    %220 = vmatpush1.msra.mxu0 %v131
    %221 = vmatprep.subr.mxu0 0.0
    %222 = vmatpush1.msra.mxu0 %v133
    %223 = vmatprep.subr.mxu0 0.0
    %224 = vmatpush1.msra.mxu0 0.0
    %225 = vmatprep.subr.mxu0 0.0
    %226 = vmatpush1.msra.mxu0 0.0
    %227 = vmatprep.subr.mxu0 0.0
    %228 = vmatpush1.msra.mxu0 0.0
    %229 = vmatprep.subr.mxu0 0.0
    %230 = vmatpush1.msra.mxu0 0.0
    %231 = vmatprep.subr.mxu0 0.0
    %232 = vmatpush1.msra.mxu0 0.0
    %233 = vmatprep.subr.mxu0 0.0
    %234 = vmatpush1.msra.mxu0 0.0
    %235 = vmatprep.subr.mxu0 0.0
    %236 = vmatpush1.msra.mxu0 0.0
    %237 = vmatprep.subr.mxu0 0.0
    %238 = vmatpush1.msra.mxu0 0.0
    %239 = vmatprep.subr.mxu0 0.0
    %240 = vmatpush1.msra.mxu0 0.0
    %241 = vmatprep.subr.mxu0 0.0
    %242 = vmatpush1.msra.mxu0 0.0
    %243 = vmatprep.subr.mxu0 0.0
    %244 = vmatpush1.msra.mxu0 0.0
    %245 = vmatprep.subr.mxu0 0.0
    %246 = vmatpush1.msra.mxu0 0.0
    %247 = vmatprep.subr.mxu0 0.0
    %248 = vmatpush1.msra.mxu0 0.0
    %249 = vmatprep.subr.mxu0 0.0
    %250 = vmatpush1.msra.mxu0 0.0
    %251 = vmatprep.subr.mxu0 0.0
    %252 = vmatpush1.msra.mxu0 0.0
    %253 = vmatprep.subr.mxu0 0.0
    %254 = vmatpush1.msra.mxu0 0.0
    %255 = vmatprep.subr.mxu0 0.0
    %256 = vmatpush1.msra.mxu0 0.0
    %257 = vmatprep.subr.mxu0 0.0
    %258 = vmatpush1.msra.mxu0 0.0
    %259 = vmatprep.subr.mxu0 0.0
    %260 = vmatpush1.msra.mxu0 0.0
    %261 = vmatprep.subr.mxu0 0.0
    %262 = vmatpush1.msra.mxu0 0.0
    %263 = vmatprep.subr.mxu0 0.0
    %264 = vmatpush1.msra.mxu0 0.0
    %265 = vmatprep.subr.mxu0 0.0
    %266 = vmatpush1.msra.mxu0 0.0
    %267 = vmatprep.subr.mxu0 0.0
    %268 = vmatpush1.msra.mxu0 0.0
    %269 = vmatprep.subr.mxu0 0.0
    %270 = vmatpush1.msra.mxu0 0.0
    %271 = vmatprep.subr.mxu0 0.0
    %272 = vmatpush1.msra.mxu0 0.0
    %273 = vmatprep.subr.mxu0 0.0
    %274 = vmatpush1.msra.mxu0 0.0
    %275 = vmatprep.subr.mxu0 0.0
    %276 = vmatpush1.msra.mxu0 0.0
    %277 = vmatprep.subr.mxu0 0.0
    %278 = vmatpush1.msra.mxu0 0.0
    %279 = vmatprep.subr.mxu0 0.0
    %280 = vmatpush1.msra.mxu0 0.0
    %281 = vmatprep.subr.mxu0 0.0
    %282 = vmatpush1.msra.mxu0 0.0
    %283 = vmatprep.mubr.f32.mxu0 0.0
    %284 = vmatmul.mubr.f32.gmra.mrb[0].mxu0 %v217
    %v285 = vpop.f32.mrb[0].mxu0
    %v286 = vadd.f32 0.0, %v285
    %v287 = vpop.f32.mrb[0].mxu0
    %288 = vdwg.mxu0
    %v289 = vmax.f32 %v207, 1e-30
    %v290 = vmax.f32 %v212, 1e-30
    %v291 = vrcp.pop %v289
    %v292 = vrcp.pop %v290
    %v293 = vmul.f32 %v289, %v291
    %v294 = vmul.f32 %v290, %v292
    %v295 = vsub.f32 2.0, %v293
    %v296 = vsub.f32 2.0, %v294
    %v297 = vmul.f32 %v291, %v295
    %v298 = vmul.f32 %v292, %v296
    %300 = vset.pattern.permute.xlu0 0
    %301 = vperm.xlu0 %300, %v297
    %v302 = vpop.permute.xlu0 %301
    %305 = vset.pattern.permute.xlu0 0
    %306 = vperm.xlu0 %305, %v298
    %v307 = vpop.permute.xlu0 %306
    %v309 = vmul.f32 %v131, %v302
    %v310 = vmul.f32 %v133, %v307
    %v311 = vmax.f32 %v286, 1e-30
    %v312 = vrcp.pop %v311
    %v313 = vmul.f32 %v311, %v312
    %v314 = vsub.f32 2.0, %v313
    %v315 = vmul.f32 %v312, %v314
    %v316 = vlaneseq
    %v317 = vshrl.u32 %v316, 7
    %v318 = vsub.s32 0, %v317
    %v319 = vrot.slane %v315, %v318
    %v320 = vmul.f32 %v131, %v319
    %v321 = vmul.f32 %v133, %v319
    %322 = vset.pattern.permute.xlu0 0
    %323 = vperm.xlu0 %322, %v27
    %v324 = vpop.permute.xlu0 %323
    %325 = vset.pattern.permute.xlu0 0
    %326 = vperm.xlu0 %325, %v28
    %v327 = vpop.permute.xlu0 %326
    %v328 = vlaneseq
    %v329 = vshrl.u32 %v328, 7
    %v330 = vsub.s32 0, %v329
    %v331 = vrot.slane %v29, %v330
    %vm332 = vcmp.eq.s32.totalorder %v324, %v331
    %vm333 = vcmp.eq.s32.totalorder %v327, %v331
    %v334 = vsel %vm332, 1, 0
    %v335 = vsel %vm333, 1, 0
    %v336 = vcvt.s32.f32 %v334
    %v337 = vcvt.s32.f32 %v335
    %v338 = vsel %vm215, %v336, 0.0
    %339 = vadd.xlane.f32.xlu0 %v338
    %v340 = vpop.xlane.xlu0 %339
    %v341 = vsel %vm215, %v337, 0.0
    %342 = vadd.xlane.f32.xlu0 %v341
    %v343 = vpop.xlane.xlu0 %342
    %v345 = vsel %vm114, %v309, 0
    %v348 = vsel %vm114, %v310, 0
    %v351 = vsel %vm114, %v320, 0
    %v354 = vsel %vm114, %v321, 0
    %356 = vmatprep.subr.mxu0 0.0
    %357 = vmatpush1.xpose.msra.mxu0 %v351
    %358 = vmatprep.subr.mxu0 0.0
    %359 = vmatpush1.xpose.msra.mxu0 %v354
    %360 = vmatprep.subr.mxu0 0.0
    %361 = vmatpush1.xpose.msra.mxu0 0.0
    %362 = vmatprep.subr.mxu0 0.0
    %363 = vmatpush1.xpose.msra.mxu0 0.0
    %364 = vmatprep.subr.mxu0 0.0
    %365 = vmatpush1.xpose.msra.mxu0 0.0
    %366 = vmatprep.subr.mxu0 0.0
    %367 = vmatpush1.xpose.msra.mxu0 0.0
    %368 = vmatprep.subr.mxu0 0.0
    %369 = vmatpush1.xpose.msra.mxu0 0.0
    %370 = vmatprep.subr.mxu0 0.0
    %371 = vmatpush1.xpose.msra.mxu0 0.0
    %372 = vmatprep.subr.mxu0 0.0
    %373 = vmatpush1.xpose.msra.mxu0 0.0
    %374 = vmatprep.subr.mxu0 0.0
    %375 = vmatpush1.xpose.msra.mxu0 0.0
    %376 = vmatprep.subr.mxu0 0.0
    %377 = vmatpush1.xpose.msra.mxu0 0.0
    %378 = vmatprep.subr.mxu0 0.0
    %379 = vmatpush1.xpose.msra.mxu0 0.0
    %380 = vmatprep.subr.mxu0 0.0
    %381 = vmatpush1.xpose.msra.mxu0 0.0
    %382 = vmatprep.subr.mxu0 0.0
    %383 = vmatpush1.xpose.msra.mxu0 0.0
    %384 = vmatprep.subr.mxu0 0.0
    %385 = vmatpush1.xpose.msra.mxu0 0.0
    %386 = vmatprep.subr.mxu0 0.0
    %387 = vmatpush1.xpose.msra.mxu0 0.0
    %388 = vmatprep.subr.mxu0 0.0
    %389 = vmatpush1.xpose.msra.mxu0 0.0
    %390 = vmatprep.subr.mxu0 0.0
    %391 = vmatpush1.xpose.msra.mxu0 0.0
    %392 = vmatprep.subr.mxu0 0.0
    %393 = vmatpush1.xpose.msra.mxu0 0.0
    %394 = vmatprep.subr.mxu0 0.0
    %395 = vmatpush1.xpose.msra.mxu0 0.0
    %396 = vmatprep.subr.mxu0 0.0
    %397 = vmatpush1.xpose.msra.mxu0 0.0
    %398 = vmatprep.subr.mxu0 0.0
    %399 = vmatpush1.xpose.msra.mxu0 0.0
    %400 = vmatprep.subr.mxu0 0.0
    %401 = vmatpush1.xpose.msra.mxu0 0.0
    %402 = vmatprep.subr.mxu0 0.0
    %403 = vmatpush1.xpose.msra.mxu0 0.0
    %404 = vmatprep.subr.mxu0 0.0
    %405 = vmatpush1.xpose.msra.mxu0 0.0
    %406 = vmatprep.subr.mxu0 0.0
    %407 = vmatpush1.xpose.msra.mxu0 0.0
    %408 = vmatprep.subr.mxu0 0.0
    %409 = vmatpush1.xpose.msra.mxu0 0.0
    %410 = vmatprep.subr.mxu0 0.0
    %411 = vmatpush1.xpose.msra.mxu0 0.0
    %412 = vmatprep.subr.mxu0 0.0
    %413 = vmatpush1.xpose.msra.mxu0 0.0
    %414 = vmatprep.subr.mxu0 0.0
    %415 = vmatpush1.xpose.msra.mxu0 0.0
    %416 = vmatprep.subr.mxu0 0.0
    %417 = vmatpush1.xpose.msra.mxu0 0.0
    %418 = vmatprep.subr.mxu0 0.0
    %419 = vmatpush1.xpose.msra.mxu0 0.0
    %420 = vmatprep.mubr.f32.mxu0 0.0
    %421 = vmatmul.mubr.f32.gmra.mrb[0].mxu0 %v345
    %v422 = vpop.f32.mrb[0].mxu0
    %v423 = vadd.f32 1e-08, %v422
    %v424 = vpop.f32.mrb[0].mxu0
    %425 = vmatprep.mubr.f32.mxu0 0.0
    %426 = vmatmul.mubr.f32.gmra.mrb[0].mxu0 %v348
    %v427 = vpop.f32.mrb[0].mxu0
    %v428 = vadd.f32 1e-08, %v427
    %v429 = vpop.f32.mrb[0].mxu0
    %430 = vdwg.mxu0
    %v431 = vlog2.pop %v423
    %v432 = vmul.f32 %v431, 0.6931472
    %v433 = vlog2.pop %v428
    %v434 = vmul.f32 %v433, 0.6931472
    %v435 = vmul.f32 %v336, %v432
    %v436 = vmul.f32 %v337, %v434
    %v437 = vsel %vm215, %v435, 0.0
    %438 = vadd.xlane.f32.xlu0 %v437
    %v439 = vpop.xlane.xlu0 %438
    %v440 = vsel %vm215, %v436, 0.0
    %441 = vadd.xlane.f32.xlu0 %v440
    %v442 = vpop.xlane.xlu0 %441
    %v443 = vmax.f32 %v340, 1e-30
    %v444 = vmax.f32 %v343, 1e-30
    %v445 = vrcp.pop %v443
    %v446 = vrcp.pop %v444
    %v447 = vmul.f32 %v443, %v445
    %v448 = vmul.f32 %v444, %v446
    %v449 = vsub.f32 2.0, %v447
    %v450 = vsub.f32 2.0, %v448
    %v451 = vmul.f32 %v445, %v449
    %v452 = vmul.f32 %v446, %v450
    %v453 = vmul.f32 %v439, %v451
    %v454 = vmul.f32 %v442, %v452
    %v455 = vadd.f32 %v453, %v454
    %v456 = vrot.slane %v455, 4
    %v457 = vadd.f32 %v455, %v456
    %v458 = vrot.slane %v457, 2
    %v459 = vadd.f32 %v457, %v458
    %v460 = vrot.slane %v459, 1
    %v461 = vadd.f32 %v459, %v460
    %v462 = vmul.f32 %v461, -0.0625
    %463 = vmatprep.subr.mxu0 0.0
    %464 = vmatpush1.msra.mxu0 %v309
    %465 = vmatprep.subr.mxu0 0.0
    %466 = vmatpush1.msra.mxu0 %v310
    %467 = vmatprep.subr.mxu0 0.0
    %468 = vmatpush1.msra.mxu0 0.0
    %469 = vmatprep.subr.mxu0 0.0
    %470 = vmatpush1.msra.mxu0 0.0
    %471 = vmatprep.subr.mxu0 0.0
    %472 = vmatpush1.msra.mxu0 0.0
    %473 = vmatprep.subr.mxu0 0.0
    %474 = vmatpush1.msra.mxu0 0.0
    %475 = vmatprep.subr.mxu0 0.0
    %476 = vmatpush1.msra.mxu0 0.0
    %477 = vmatprep.subr.mxu0 0.0
    %478 = vmatpush1.msra.mxu0 0.0
    %479 = vmatprep.subr.mxu0 0.0
    %480 = vmatpush1.msra.mxu0 0.0
    %481 = vmatprep.subr.mxu0 0.0
    %482 = vmatpush1.msra.mxu0 0.0
    %483 = vmatprep.subr.mxu0 0.0
    %484 = vmatpush1.msra.mxu0 0.0
    %485 = vmatprep.subr.mxu0 0.0
    %486 = vmatpush1.msra.mxu0 0.0
    %487 = vmatprep.subr.mxu0 0.0
    %488 = vmatpush1.msra.mxu0 0.0
    %489 = vmatprep.subr.mxu0 0.0
    %490 = vmatpush1.msra.mxu0 0.0
    %491 = vmatprep.subr.mxu0 0.0
    %492 = vmatpush1.msra.mxu0 0.0
    %493 = vmatprep.subr.mxu0 0.0
    %494 = vmatpush1.msra.mxu0 0.0
    %495 = vmatprep.subr.mxu0 0.0
    %496 = vmatpush1.msra.mxu0 0.0
    %497 = vmatprep.subr.mxu0 0.0
    %498 = vmatpush1.msra.mxu0 0.0
    %499 = vmatprep.subr.mxu0 0.0
    %500 = vmatpush1.msra.mxu0 0.0
    %501 = vmatprep.subr.mxu0 0.0
    %502 = vmatpush1.msra.mxu0 0.0
    %503 = vmatprep.subr.mxu0 0.0
    %504 = vmatpush1.msra.mxu0 0.0
    %505 = vmatprep.subr.mxu0 0.0
    %506 = vmatpush1.msra.mxu0 0.0
    %507 = vmatprep.subr.mxu0 0.0
    %508 = vmatpush1.msra.mxu0 0.0
    %509 = vmatprep.subr.mxu0 0.0
    %510 = vmatpush1.msra.mxu0 0.0
    %511 = vmatprep.subr.mxu0 0.0
    %512 = vmatpush1.msra.mxu0 0.0
    %513 = vmatprep.subr.mxu0 0.0
    %514 = vmatpush1.msra.mxu0 0.0
    %515 = vmatprep.subr.mxu0 0.0
    %516 = vmatpush1.msra.mxu0 0.0
    %517 = vmatprep.subr.mxu0 0.0
    %518 = vmatpush1.msra.mxu0 0.0
    %519 = vmatprep.subr.mxu0 0.0
    %520 = vmatpush1.msra.mxu0 0.0
    %521 = vmatprep.subr.mxu0 0.0
    %522 = vmatpush1.msra.mxu0 0.0
    %523 = vmatprep.subr.mxu0 0.0
    %524 = vmatpush1.msra.mxu0 0.0
    %525 = vmatprep.subr.mxu0 0.0
    %526 = vmatpush1.msra.mxu0 0.0
    %527 = vmatprep.mubr.f32.mxu0 0.0
    %528 = vmatmul.mubr.f32.gmra.mrb[0].mxu0 %v217
    %v529 = vpop.f32.mrb[0].mxu0
    %v530 = vadd.f32 0.0, %v529
    %v531 = vpop.f32.mrb[0].mxu0
    %532 = vdwg.mxu0
    %v533 = vmul.f32 %v530, 0.0625
    %v534 = vadd.f32 %v533, 1e-08
    %v535 = vlog2.pop %v534
    %v536 = vmul.f32 %v535, 0.6931472
    %vm537 = vcmask 188416
    %v538 = vsel %vm537, %v536, 0.0
    %539 = vadd.xlane.f32.xlu0 %v538
    %v540 = vpop.xlane.xlu0 %539
    %v541 = vmul.f32 %v540, -0.041666668
    %vm542 = vcmask 0
    %543 = vst.msk [vmem:[#allocation2] sm:$0x1] %vm542, %v462
    %544 = vst.msk [vmem:[#allocation4] sm:$0x1] %vm542, %v541
    // Predicated region
    $region18: #{tpu_custom_call.1} parent=1 // pred_check
      _
    $region19: #{tpu_custom_call.1} parent=1 // pred_check_branch
      %546 = sbr.rel (0) target = $region21
    $region20: #{tpu_custom_call.1} parent=1 // pred_region
      %s548 = ssub.s32 16, 16
      %549 = vsyncadd [#allocation3], %s548
      %s551 = sshll.u32 [#allocation2], 4
      %s552 = int_to_ptr.vmem [resolvable:$true] %s551
      %554 = dma.vmem_to_hbm [thread:$0]  %s552, 16, %s4, [#allocation3]
    $region21: #{tpu_custom_call.1} parent=1 // pred_fallthru
      _
    // Predicated region
    $region22: #{tpu_custom_call.1} parent=1 // pred_check
      _
    $region23: #{tpu_custom_call.1} parent=1 // pred_check_branch
      %556 = sbr.rel (0) target = $region25
    $region24: #{tpu_custom_call.1} parent=1 // pred_region
      %s558 = ssub.s32 16, 16
      %559 = vsyncadd [#allocation5], %s558
      %s561 = sshll.u32 [#allocation4], 4
      %s562 = int_to_ptr.vmem [resolvable:$true] %s561
      %564 = dma.vmem_to_hbm [thread:$0]  %s562, 16, %s5, [#allocation5]
    $region25: #{tpu_custom_call.1} parent=1 // pred_fallthru
      _
    // Predicated region
    $region26: #{tpu_custom_call.1} parent=1 // pred_check
      _
    $region27: #{tpu_custom_call.1} parent=1 // pred_check_branch
      %566 = sbr.rel (0) target = $region29
    $region28: #{tpu_custom_call.1} parent=1 // pred_region
      %567 = dma.done [#allocation3], 16
    $region29: #{tpu_custom_call.1} parent=1 // pred_fallthru
      _
    // Predicated region
    $region30: #{tpu_custom_call.1} parent=1 // pred_check
      _
    $region31: #{tpu_custom_call.1} parent=1 // pred_check_branch
      %569 = sbr.rel (0) target = $region33
    $region32: #{tpu_custom_call.1} parent=1 // pred_region
      %570 = dma.done [#allocation5], 16
    $region33: #{tpu_custom_call.1} parent=1 // pred_fallthru
      _
    %571 = vsyncpa [#allocation3], 1
    %572 = vsyncpa [#allocation5], 1

</llo_original>
